<compile_context>
chip_gen: v5e
topology: v5e:2x2
jax: 0.10.0
libtpu: 0.0.40
codegen_flags: <defaults>
</compile_context>

<pallas_src>
import jax
import jax.numpy as jnp
from jax import lax
from jax.experimental import pallas as pl
from jax.experimental.pallas import tpu as pltpu


def _logreg_kernel(x_ref, w_ref, b_ref, o_ref, acc_ref):
    # x_ref: [tb, tk] VMEM, w_ref: [1, tk] VMEM, b_ref: [1, 1] SMEM,
    # o_ref: [1, tb] VMEM, acc_ref: [1, tb] f32 VMEM scratch.
    k = pl.program_id(1)

    @pl.when(k == 0)
    def _():
        acc_ref[...] = jnp.zeros_like(acc_ref)

    # Contract on the feature dim with the weight as LHS -> lane-dense [1, tb]
    # MXU result, accumulated in f32.
    acc_ref[...] += lax.dot_general(
        w_ref[...],
        x_ref[...],
        dimension_numbers=(((1,), (1,)), ((), ())),
        preferred_element_type=jnp.float32,
    )

    @pl.when(k == pl.num_programs(1) - 1)
    def _():
        z = acc_ref[...] + b_ref[0, 0]
        # sigmoid = 1/(1+exp(-z)); exp runs on the EUP.  For very negative z,
        # exp overflows to inf and the result saturates to 0.0 (correct limit).
        o_ref[...] = (1.0 / (1.0 + jnp.exp(-z))).astype(o_ref.dtype)


def _vmem_budget_bytes():
    """Per-generation VMEM budget: ~48 MiB on 64 MiB parts, ~100 MiB on 128 MiB parts."""
    capacity = None
    try:
        info = pltpu.get_tpu_info()
        capacity = getattr(info, "vmem_capacity_bytes", None)
    except Exception:
        capacity = None
    if capacity is None:
        capacity = 64 * 1024 * 1024  # conservative (v7x-sized)
    if capacity >= 128 * 1024 * 1024:
        return 100 * 1024 * 1024
    return 48 * 1024 * 1024


def _choose_tiles(B, D, vmem_budget_bytes, itemsize=4):
    # --- Feature (K) tile: full D unless D is large and 128-divisible. ------
    max_tk = 2048
    if D > max_tk and D % 128 == 0:
        tk = max_tk
        while D % tk != 0:
            tk -= 128
        tk = max(tk, 128)
    else:
        tk = D  # partial K blocks would poison the reduction; keep tk | D.

    # --- Batch tile from a byte budget (multi-MiB tiles ~= HBM roofline). ---
    target_tile_bytes = 8 * 1024 * 1024
    tb = (target_tile_bytes // (itemsize * tk)) // 128 * 128
    tb = max(tb, 128)
    # Never allocate far more than the batch itself needs.
    tb = min(tb, pl.cdiv(B, 128) * 128)
    tb = max(tb, 128)

    def footprint(tb_):
        # double-buffered x + double-buffered w tile + double-buffered out
        # + accumulator + slack for semaphores / misc.
        return (2 * tb_ * tk + 2 * tk + 2 * tb_ + tb_) * itemsize + (2 << 20)

    while tb > 128 and footprint(tb) > vmem_budget_bytes:
        tb -= 128
    return tb, tk


def logistic_regression(x, weight, bias):
    """x: [B, D] f32, weight: [1, D] f32, bias: [1] f32 -> [B, 1] f32."""
    B, D = x.shape
    x = x.astype(jnp.float32)
    weight = weight.astype(jnp.float32)
    bias_2d = jnp.reshape(bias, (1, 1)).astype(jnp.float32)

    vmem_budget = _vmem_budget_bytes()
    tb, tk = _choose_tiles(B, D, vmem_budget)
    grid = (pl.cdiv(B, tb), D // tk)

    cost = pl.CostEstimate(
        flops=2 * B * D,
        transcendentals=B,
        bytes_accessed=(B * D + D + B + 1) * 4,
    )

    out = pl.pallas_call(
        _logreg_kernel,
        out_shape=jax.ShapeDtypeStruct((1, B), jnp.float32),
        grid=grid,
        in_specs=[
            pl.BlockSpec((tb, tk), lambda i, k: (i, k)),   # x tile
            pl.BlockSpec((1, tk), lambda i, k: (0, k)),    # weight slice
            pl.BlockSpec((1, 1), lambda i, k: (0, 0),
                         memory_space=pltpu.MemorySpace.SMEM),  # bias scalar
        ],
        out_specs=pl.BlockSpec((1, tb), lambda i, k: (0, i)),  # lane-dense slab
        scratch_shapes=[pltpu.VMEM((1, tb), jnp.float32)],     # partial-sum acc
        compiler_params=pltpu.CompilerParams(
            # batch axis parallel (megacore), reduction axis arbitrary.
            # TODO(synk): on v7x, verify in a trace that both TensorCores
            # participate; switch to pltpu.CORE_PARALLEL if not.
            dimension_semantics=("parallel", "arbitrary"),
            vmem_limit_bytes=int(vmem_budget),
        ),
        cost_estimate=cost,
    )(x, weight, bias_2d)

    # Back to the PyTorch layout [B, 1].
    return out.reshape(B, 1)


if __name__ == "__main__":
    key = jax.random.PRNGKey(0)
    k_x, k_w, k_b = jax.random.split(key, 3)

    batch, input_dim = 8, 32

    # Deterministic synthetic parameters (PyTorch Linear init bound: 1/sqrt(input_dim))
    bound = 1.0 / jnp.sqrt(jnp.float32(input_dim))
    x = jax.random.normal(k_x, (batch, input_dim), dtype=jnp.float32)
    weight = jax.random.uniform(
        k_w, (1, input_dim), minval=-bound, maxval=bound, dtype=jnp.float32
    )
    bias = jax.random.uniform(
        k_b, (1,), minval=-bound, maxval=bound, dtype=jnp.float32
    )

    out = logistic_regression(x, weight, bias)
    out = jax.block_until_ready(out)

    # Reference check (pure JAX)
    ref = jax.nn.sigmoid(x @ weight.T + bias)
    assert out.shape == (batch, 1)
    assert jnp.allclose(out, ref, atol=1e-5), "mismatch vs reference"

    print("KERNEL_OK")
</pallas_src>

<mosaic_0001>
module attributes {stable_mosaic.version = 11 : i64} {
  func.func @_logreg_kernel(%arg0: i32, %arg1: i32, %arg2: memref<128x32xf32, #tpu.memory_space<vmem>>, %arg3: memref<1x32xf32, #tpu.memory_space<vmem>>, %arg4: memref<1x1xf32, #tpu.memory_space<smem>>, %arg5: memref<1x128xf32, #tpu.memory_space<vmem>>, %arg6: memref<1x128xf32, #tpu.memory_space<vmem>>) attributes {dimension_semantics = [#tpu.dimension_semantics<parallel>, #tpu.dimension_semantics<arbitrary>], iteration_bounds = array<i64: 1, 1>, scalar_prefetch = 0 : i64, scratch_operands = 1 : i64, tpu.core_type = #tpu.core_type<tc>, window_params = [{transform_indices = @transform_0, window_bounds = array<i64: 128, 32>}, {transform_indices = @transform_1, window_bounds = array<i64: 1, 32>}, {transform_indices = @transform_2, window_bounds = array<i64: 1, 1>}, {transform_indices = @transform_3, window_bounds = array<i64: 1, 128>}]} {
    %c0_i32 = arith.constant 0 : i32
    %0 = arith.cmpi eq, %arg1, %c0_i32 : i32
    %1 = arith.extui %0 : i1 to i32
    %c0_i32_0 = arith.constant 0 : i32
    %2 = arith.cmpi ne, %1, %c0_i32_0 : i32
    scf.if %2 {
      %cst_10 = arith.constant 0.000000e+00 : f32
      %12 = vector.broadcast %cst_10 : f32 to vector<1x128xf32>
      %c0_11 = arith.constant 0 : index
      %c0_12 = arith.constant 0 : index
      %13 = vector.load %arg6[%c0_11, %c0_12] : memref<1x128xf32, #tpu.memory_space<vmem>>, vector<1x128xf32>
      tpu.vector_store %arg6[%c0_11, %c0_12], %12 {strides = array<i32>} : memref<1x128xf32, #tpu.memory_space<vmem>>, vector<1x128xf32>,
    } else {
    }
    %c0 = arith.constant 0 : index
    %c0_1 = arith.constant 0 : index
    %3 = vector.load %arg6[%c0, %c0_1] : memref<1x128xf32, #tpu.memory_space<vmem>>, vector<1x128xf32>
    %c0_2 = arith.constant 0 : index
    %c0_3 = arith.constant 0 : index
    %4 = vector.load %arg3[%c0_2, %c0_3] : memref<1x32xf32, #tpu.memory_space<vmem>>, vector<1x32xf32>
    %c0_4 = arith.constant 0 : index
    %c0_5 = arith.constant 0 : index
    %5 = vector.load %arg2[%c0_4, %c0_5] : memref<128x32xf32, #tpu.memory_space<vmem>>, vector<128x32xf32>
    %cst = arith.constant dense<0.000000e+00> : vector<1x128xf32>
    %6 = tpu.matmul %4, %5, %cst {dimension_numbers = #tpu.dot_dimension_numbers<[1], [1], [0], [0], [0, 0, 1, 0], [], []>} : vector<1x32xf32>, vector<128x32xf32>, vector<1x128xf32> -> vector<1x128xf32>
    %7 = arith.addf %3, %6 : vector<1x128xf32>
    %c0_6 = arith.constant 0 : index
    %c0_7 = arith.constant 0 : index
    %8 = vector.load %arg6[%c0_6, %c0_7] : memref<1x128xf32, #tpu.memory_space<vmem>>, vector<1x128xf32>
    tpu.vector_store %arg6[%c0_6, %c0_7], %7 {strides = array<i32>} : memref<1x128xf32, #tpu.memory_space<vmem>>, vector<1x128xf32>,
    %c0_i32_8 = arith.constant 0 : i32
    %9 = arith.cmpi eq, %arg1, %c0_i32_8 : i32
    %10 = arith.extui %9 : i1 to i32
    %c0_i32_9 = arith.constant 0 : i32
    %11 = arith.cmpi ne, %10, %c0_i32_9 : i32
    scf.if %11 {
      %c0_10 = arith.constant 0 : index
      %c0_11 = arith.constant 0 : index
      %12 = vector.load %arg6[%c0_10, %c0_11] : memref<1x128xf32, #tpu.memory_space<vmem>>, vector<1x128xf32>
      %c0_12 = arith.constant 0 : index
      %c0_13 = arith.constant 0 : index
      %13 = memref.load %arg4[%c0_12, %c0_13] : memref<1x1xf32, #tpu.memory_space<smem>>
      %14 = vector.broadcast %13 : f32 to vector<1x128xf32>
      %15 = arith.addf %12, %14 : vector<1x128xf32>
      %cst_14 = arith.constant 0.000000e+00 : f32
      %16 = vector.broadcast %cst_14 : f32 to vector<1x128xf32>
      %17 = arith.subf %16, %15 : vector<1x128xf32>
      %18 = math.exp %17 : vector<1x128xf32>
      %cst_15 = arith.constant 1.000000e+00 : f32
      %19 = vector.broadcast %cst_15 : f32 to vector<1x128xf32>
      %20 = arith.addf %19, %18 : vector<1x128xf32>
      %cst_16 = arith.constant 1.000000e+00 : f32
      %21 = vector.broadcast %cst_16 : f32 to vector<1x128xf32>
      %22 = arith.divf %21, %20 : vector<1x128xf32>
      %c0_17 = arith.constant 0 : index
      %c0_18 = arith.constant 0 : index
      %23 = vector.load %arg5[%c0_17, %c0_18] : memref<1x128xf32, #tpu.memory_space<vmem>>, vector<1x128xf32>
      tpu.vector_store %arg5[%c0_17, %c0_18], %22 {strides = array<i32>} : memref<1x128xf32, #tpu.memory_space<vmem>>, vector<1x128xf32>,
    } else {
    }
    return
  }
  func.func @transform_0(%arg0: i32, %arg1: i32) -> (i32, i32) {
    %c0_i32 = arith.constant 0 : i32
    return %arg0, %arg1 : i32, i32
  }
  func.func @transform_1(%arg0: i32, %arg1: i32) -> (i32, i32) {
    %c0_i32 = arith.constant 0 : i32
    %c0_i32_0 = arith.constant 0 : i32
    return %c0_i32, %arg1 : i32, i32
  }
  func.func @transform_2(%arg0: i32, %arg1: i32) -> (i32, i32) {
    %c0_i32 = arith.constant 0 : i32
    %c0_i32_0 = arith.constant 0 : i32
    %c0_i32_1 = arith.constant 0 : i32
    return %c0_i32, %c0_i32_0 : i32, i32
  }
  func.func @transform_3(%arg0: i32, %arg1: i32) -> (i32, i32) {
    %c0_i32 = arith.constant 0 : i32
    %c0_i32_0 = arith.constant 0 : i32
    return %c0_i32, %arg0 : i32, i32
  }
}

</mosaic_0001>

<llo_original>
// kernel: tpu_custom_call.1
$region0: #{tpu_custom_call.1}
  #allocation0 [shape = 'u32[]', space=smem, size = 0x4, offset = 0x4, fixed_abs, tag = 'smem constant byte address 0x4 - core index']
  #allocation1 [shape = 'u32[72,128]{1,0:T(1,128)}', space=vmem, size = 0x9000, scoped, tag = 'internal scratch']
  #allocation2 [shape = 'f32[1,128]{1,0:T(1,128)}', space=vmem, size = 0x200, scoped, tag = 'scratch operand']
  #allocation3 [shape = 'f32[1,1]{1,0:T(1,128)S(6)}', space=smem, size = 0x200, scoped, tag = 'scoped memory for tpu_custom_call.1']
  %s0 = inlined_call_operand.hbm [shape: f32[8,32], index: 0, kind: input, shape index: {}]
  %s1 = inlined_call_operand.vmem [shape: f32[1,32], index: 1, kind: input, shape index: {}]
  %s2 = inlined_call_operand.<no memory space> [shape: f32[1,1], index: 2, kind: input, shape index: {}]
  %s3 = inlined_call_operand.hbm [shape: f32[1,8], index: 3, kind: output, shape index: {}]
  %s4 = sld [smem:[#allocation0]]
  $region34: #{tpu_custom_call.1} parent=0
    _
  %s6 = ssub.s32 1, %s4
  %s7 = scalar_select 0, %s6, %s4
  %8 = sst [smem:[#allocation3]] %s2
  $region1: #{tpu_custom_call.1} parent=0
    #allocation4 [shape = 'u8[65536]{0}', space=vmem, size = 0x10000, scoped, tag = 'input window, operand 0, single buffered']
    #allocation5 [shape = 's32[1]{0}', space=sflag, size = 0x4, scoped, tag = 'scoped memory for tpu_custom_call.1']
    #allocation6 [shape = 's32[1]{0}', space=sflag, size = 0x4, scoped, tag = 'scoped memory for tpu_custom_call.1']
    #allocation7 [shape = 'u8[512]{0}', space=vmem, size = 0x400, scoped, tag = 'output window, operand 0, single buffered']
    %9 = vsyncpa [#allocation5], 0
    %10 = vsyncpa [#allocation6], 0
    // Predicated region
    $region2: #{tpu_custom_call.1} parent=1 // pred_check
      _
    $region3: #{tpu_custom_call.1} parent=1 // pred_check_branch
      %12 = sbr.rel (0) target = $region5
    $region4: #{tpu_custom_call.1} parent=1 // pred_region
      %14 = vsyncadd [#allocation5], 1920
      %s15 = sshll.u32 %s0, 4
      %s16 = int_to_ptr.hbm [resolvable:$true] %s15
      %s17 = sshll.u32 [#allocation4], 4
      %s18 = int_to_ptr.vmem [resolvable:$true] %s17
      %23 = dma.hbm_to_vmem [thread:$0]  %s16, 128, %s18, [#allocation5], 128, 128, 8
    $region5: #{tpu_custom_call.1} parent=1 // pred_fallthru
      _
    // Predicated region
    $region6: #{tpu_custom_call.1} parent=1 // pred_check
      _
    $region7: #{tpu_custom_call.1} parent=1 // pred_check_branch
      %25 = sbr.rel (0) target = $region9
    $region8: #{tpu_custom_call.1} parent=1 // pred_region
      _
    $region9: #{tpu_custom_call.1} parent=1 // pred_fallthru
      _
    // Predicated region
    $region10: #{tpu_custom_call.1} parent=1 // pred_check
      _
    $region11: #{tpu_custom_call.1} parent=1 // pred_check_branch
      %27 = sbr.rel (0) target = $region13
    $region12: #{tpu_custom_call.1} parent=1 // pred_region
      _
    $region13: #{tpu_custom_call.1} parent=1 // pred_fallthru
      _
    // Predicated region
    $region14: #{tpu_custom_call.1} parent=1 // pred_check
      _
    $region15: #{tpu_custom_call.1} parent=1 // pred_check_branch
      %29 = sbr.rel (0) target = $region17
    $region16: #{tpu_custom_call.1} parent=1 // pred_region
      %31 = dma.done [#allocation5], 2048
    $region17: #{tpu_custom_call.1} parent=1 // pred_fallthru
      _
    %p32 = scmp.eq.s32.totalorder 0, 0
    // Predicated region
    $region18: #{tpu_custom_call.1} parent=1 // pred_check
      %p33 = pneg %p32
    $region19: #{tpu_custom_call.1} parent=1 // pred_check_branch
      %35 = sbr.rel (%p33) target = $region21
    $region20: #{tpu_custom_call.1} parent=1 // pred_region
      %36 = vst [vmem:[#allocation2] sm:$0x1] 0.0
    $region21: #{tpu_custom_call.1} parent=1 // pred_fallthru
      _
    %v37 = vld [vmem:[#allocation2] sm:$0x1]
    %v38 = vld [vmem:[%s1] sm:$0x1]
    %v39 = vld [vmem:[#allocation4] sm:$0xff]
    %v40 = vld [vmem:[#allocation4 + $0x8] sm:$0xff]
    %v41 = vld [vmem:[#allocation4 + $0x10] sm:$0xff]
    %v42 = vld [vmem:[#allocation4 + $0x18] sm:$0xff]
    %v43 = vld [vmem:[#allocation4 + $0x20] sm:$0xff]
    %v44 = vld [vmem:[#allocation4 + $0x28] sm:$0xff]
    %v45 = vld [vmem:[#allocation4 + $0x30] sm:$0xff]
    %v46 = vld [vmem:[#allocation4 + $0x38] sm:$0xff]
    %v47 = vld [vmem:[#allocation4 + $0x40] sm:$0xff]
    %v48 = vld [vmem:[#allocation4 + $0x48] sm:$0xff]
    %v49 = vld [vmem:[#allocation4 + $0x50] sm:$0xff]
    %v50 = vld [vmem:[#allocation4 + $0x58] sm:$0xff]
    %v51 = vld [vmem:[#allocation4 + $0x60] sm:$0xff]
    %v52 = vld [vmem:[#allocation4 + $0x68] sm:$0xff]
    %v53 = vld [vmem:[#allocation4 + $0x70] sm:$0xff]
    %v54 = vld [vmem:[#allocation4 + $0x78] sm:$0xff]
    %vm55 = vcmask 261120
    %v57 = vsel %vm55, %v38, 0
    %v60 = vsel %vm55, %v39, 0
    %v63 = vsel %vm55, %v40, 0
    %v66 = vsel %vm55, %v41, 0
    %v69 = vsel %vm55, %v42, 0
    %v72 = vsel %vm55, %v43, 0
    %v75 = vsel %vm55, %v44, 0
    %v78 = vsel %vm55, %v45, 0
    %v81 = vsel %vm55, %v46, 0
    %v84 = vsel %vm55, %v47, 0
    %v87 = vsel %vm55, %v48, 0
    %v90 = vsel %vm55, %v49, 0
    %v93 = vsel %vm55, %v50, 0
    %v96 = vsel %vm55, %v51, 0
    %v99 = vsel %vm55, %v52, 0
    %v102 = vsel %vm55, %v53, 0
    %v105 = vsel %vm55, %v54, 0
    %107 = vmatpush.xpose.msra.mxu0 %v105
    %108 = vmatpush.xpose.msra.mxu0 %v102
    %109 = vmatpush.xpose.msra.mxu0 %v99
    %110 = vmatpush.xpose.msra.mxu0 %v96
    %111 = vmatpush.xpose.msra.mxu0 %v93
    %112 = vmatpush.xpose.msra.mxu0 %v90
    %113 = vmatpush.xpose.msra.mxu0 %v87
    %114 = vmatpush.xpose.msra.mxu0 %v84
    %115 = vmatpush.xpose.msra.mxu0 %v81
    %116 = vmatpush.xpose.msra.mxu0 %v78
    %117 = vmatpush.xpose.msra.mxu0 %v75
    %118 = vmatpush.xpose.msra.mxu0 %v72
    %119 = vmatpush.xpose.msra.mxu0 %v69
    %120 = vmatpush.xpose.msra.mxu0 %v66
    %121 = vmatpush.xpose.msra.mxu0 %v63
    %122 = vmatpush.xpose.msra.mxu0 %v60
    %123 = vmatmul.f32.gmra.mxu0 %v57
    %v124 = vpop.f32.mrf.mxu0
    %v125 = vadd.f32 0.0, %v124
    %126 = vdwg.mxu0
    %v127 = vadd.f32 %v37, %v125
    %128 = vst [vmem:[#allocation2] sm:$0x1] %v127
    // Predicated region
    $region22: #{tpu_custom_call.1} parent=1 // pred_check
      %p129 = pneg %p32
    $region23: #{tpu_custom_call.1} parent=1 // pred_check_branch
      %131 = sbr.rel (%p129) target = $region25
    $region24: #{tpu_custom_call.1} parent=1 // pred_region
      %v132 = vld [vmem:[#allocation2] sm:$0x1]
      %s133 = sld [smem:[#allocation3]]
      %v134 = vstv %s133
      %v135 = vadd.f32 %v132, %v134
      %v136 = vsub.f32 0.0, %v135
      %v137 = vmul.f32 %v136, 1.442695
      %v138 = vpow.pop %v137
      %v139 = vadd.f32 %v138, 1.0
      %v140 = vrcp.pop %v139
      %v141 = vmul.f32 %v139, %v140
      %v142 = vsub.f32 1.0, %v141
      %v143 = vmul.f32 %v140, %v142
      %v144 = vadd.f32 %v140, %v143
      %vm145 = vweird.f32 %v139
      %vm146 = vweird.f32 %v140
      %vm147 = vmor %vm145, %vm146
      %v148 = vsel %vm147, %v140, %v144
      %v149 = vand.u32 2147483647, %v139
      %vm150 = vcmp.eq.f32.partialorder %v149, 8.507059e+37
      %v151 = vand.u32 %v139, 2147483648
      %v152 = vor.u32 1.1754944e-38, %v151
      %v153 = vsel %vm150, %v152, %v148
      %v154 = vmul.f32 1.0, %v153
      %155 = vst [vmem:[#allocation7] sm:$0x1] %v154
    $region25: #{tpu_custom_call.1} parent=1 // pred_fallthru
      _
    // Predicated region
    $region26: #{tpu_custom_call.1} parent=1 // pred_check
      _
    $region27: #{tpu_custom_call.1} parent=1 // pred_check_branch
      %157 = sbr.rel (0) target = $region29
    $region28: #{tpu_custom_call.1} parent=1 // pred_region
      %159 = vsyncadd [#allocation6], 0
      %s161 = sshll.u32 [#allocation7], 4
      %s162 = int_to_ptr.vmem [resolvable:$true] %s161
      %s163 = sshll.u32 %s3, 4
      %s164 = int_to_ptr.hbm [resolvable:$true] %s163
      %166 = dma.vmem_to_hbm [thread:$0]  %s162, 16, %s164, [#allocation6]
    $region29: #{tpu_custom_call.1} parent=1 // pred_fallthru
      _
    // Predicated region
    $region30: #{tpu_custom_call.1} parent=1 // pred_check
      _
    $region31: #{tpu_custom_call.1} parent=1 // pred_check_branch
      %168 = sbr.rel (0) target = $region33
    $region32: #{tpu_custom_call.1} parent=1 // pred_region
      %170 = dma.done [#allocation6], 16
    $region33: #{tpu_custom_call.1} parent=1 // pred_fallthru
      _
    %171 = vsyncpa [#allocation5], 1
    %172 = vsyncpa [#allocation6], 1

</llo_original>
